<compile_context>
chip_gen: v7x
topology: tpu7x:2x2x1
jax: 0.10.0
libtpu: 0.0.40
codegen_flags: <defaults>
</compile_context>

<pallas_src>
import functools

import jax
import jax.numpy as jnp
from jax.experimental import pallas as pl
from jax.experimental.pallas import tpu as pltpu


def _round_up(v, m):
    return (v + m - 1) // m * m


def _vmem_budget():
    """Generation-aware (physical VMEM aware) scoped-VMEM limit + block budget."""
    vmem_cap = 64 * 1024 * 1024            # conservative fallback (v7x physical)
    try:
        info = pltpu.get_tpu_info()
        vmem_cap = int(getattr(info, "vmem_capacity_bytes", vmem_cap))
    except Exception:
        pass
    # Scoped limit: 3/4 of physical, capped at 100 MiB.
    #   v5e/v6e (128 MiB) -> 96 MiB ; v7x (64 MiB) -> 48 MiB.
    vmem_limit = min(int(0.75 * vmem_cap), 100 * 1024 * 1024)
    # Block-choosing budget leaves headroom for compiler scratch / spills.
    budget = int(0.70 * vmem_limit)
    return vmem_limit, budget


def _choose_block_batch(B, hw_pad, c, d_pad, p_pad, dist_bytes, budget):
    """Pick how many images to fold into one grid step."""
    # Constant operands are double-buffered by the pipeline too.
    const_bytes = 2 * (c * d_pad * 2          # w  (bf16)
                       + d_pad * 4            # bias (f32)
                       + d_pad * p_pad * 2    # prototypes^T (bf16)
                       + p_pad * 4)           # ||p||^2 (f32)

    def step_bytes(bt):
        n = bt * hw_pad
        x_b = n * c * 2                        # bf16 input tile
        d_b = n * p_pad * dist_bytes           # distances tile
        o_b = 2 * bt * p_pad * 4               # min + avg tiles (f32)
        io = 2 * (x_b + d_b + o_b)             # double-buffered pipeline
        # In-kernel f32 temporaries: z (N, D_pad) plus ~3 live (N, P_pad)
        # values (xp, dist, masked copy).
        tmp = n * d_pad * 4 + 3 * n * p_pad * 4
        return const_bytes + io + tmp

    max_bt = max(1, B // 2)                    # keep >= 2 grid steps (2 TCs on v7x)
    bt = 1
    while (bt * 2 <= max_bt
           and bt * hw_pad < 2048              # MXU M-dim target (amortize grid overhead)
           and step_bytes(bt * 2) <= budget):
        bt *= 2
    return bt


def _proto_kernel(x_ref, w_ref, b_ref, pT_ref, p2_ref,
                  dist_ref, min_ref, avg_ref, *, hw_real):
    """One grid step == Bt batch elements.

    x_ref   : (Bt, HW_pad, C)       backbone features (bf16), spatial flattened
    w_ref   : (C, D_pad)            add-on 1x1 conv weight, transposed, D-padded (bf16)
    b_ref   : (1, D_pad)            add-on bias; padded columns = -1e9 (f32)
    pT_ref  : (D_pad, P_pad)        prototype vectors, pre-transposed, zero-padded (bf16)
    p2_ref  : (1, P_pad)            precomputed ||p||^2 (f32)
    dist_ref: (Bt, HW_pad, P_pad)   L2 distances per spatial location
    min_ref : (Bt, 1, P_pad)        global min over real spatial rows (f32)
    avg_ref : (Bt, 1, P_pad)        global mean over real spatial rows (f32)
    """
    bt, hw_pad, c = x_ref.shape
    p_pad = pT_ref.shape[1]

    # hw_pad is a multiple of 16 (bf16 sublane tile) -> reshape is a layout no-op.
    x = x_ref[...].reshape(bt * hw_pad, c)                          # bf16 (N, C)

    # add_on_layers: 1x1 conv + sigmoid.  bf16 MXU operands, f32 accumulate;
    # elementwise/EUP math kept in f32 (v5e has no bf16 VPU/EUP path).
    # Padded D columns: w==0 and bias==-1e9 -> sigmoid gives exactly 0 there.
    z = jax.nn.sigmoid(
        jnp.dot(x, w_ref[...], preferred_element_type=jnp.float32)
        + b_ref[...])                                               # f32 (N, D_pad)

    z2 = jnp.sum(z * z, axis=1, keepdims=True)                      # f32 (N, 1)
    xp = jnp.dot(z.astype(jnp.bfloat16), pT_ref[...],
                 preferred_element_type=jnp.float32)                # f32 (N, P_pad)

    # relu(||z||^2 - 2 z.p + ||p||^2)
    dist = jnp.maximum(z2 - 2.0 * xp + p2_ref[...], 0.0)            # (N, P_pad)
    dist3 = dist.reshape(bt, hw_pad, p_pad)
    dist_ref[...] = dist3.astype(dist_ref.dtype)

    if hw_real == hw_pad:
        # No padded spatial rows -> no masking needed (static branch).
        min_ref[...] = jnp.min(dist3, axis=1, keepdims=True)
        avg_ref[...] = jnp.sum(dist3, axis=1, keepdims=True) * (1.0 / hw_real)
    else:
        # Padded spatial rows must not pollute the pooled outputs.
        row = jax.lax.broadcasted_iota(jnp.int32, (1, hw_pad, 1), 1)
        valid = row < hw_real
        min_ref[...] = jnp.min(
            jnp.where(valid, dist3, jnp.finfo(jnp.float32).max),
            axis=1, keepdims=True)
        avg_ref[...] = jnp.sum(dist3 * valid.astype(jnp.float32),
                               axis=1, keepdims=True) * (1.0 / hw_real)


def prototype_chooser_forward(x_feat, mask_lab, add_on_w, add_on_b, prototypes,
                              *, distances_dtype=jnp.float32):
    """Forward of PrototypeChooser from backbone features onward.

    x_feat     : (B, C_feat, H, W)  float32 -- output of self.features(x), NCHW
    mask_lab   : unused (see note at top)
    add_on_w   : (D, C_feat, 1, 1)  1x1 conv weight (PyTorch layout)
    add_on_b   : (D,)               1x1 conv bias
    prototypes : (P, D, 1, 1)       self.prototype_vectors
    distances_dtype : dtype for the full distances output (f32 to match the
                      module; bf16 halves the dominant HBM writeback stream).

    Returns (avg_dist, min_distances, distances) exactly like the module:
      avg_dist      (B, P)
      min_distances (B, P)
      distances     (B, P, H, W)
    """
    del mask_lab  # does not affect the computed values (see module analysis)

    B, C, H, W = x_feat.shape
    D = add_on_w.shape[0]
    P = prototypes.shape[0]
    HW = H * W

    # ---- padding for lane/sublane density -------------------------------
    hw_pad = _round_up(HW, 16)           # bf16 sublane tile -> reshape free
    p_pad = _round_up(P, 128)            # lane multiple -> unmasked stores
    d_pad = _round_up(D, 128)            # lane multiple for z / MXU N & K dims

    vmem_limit, budget = _vmem_budget()
    dist_bytes = jnp.dtype(distances_dtype).itemsize
    bt = _choose_block_batch(B, hw_pad, C, d_pad, p_pad, dist_bytes, budget)
    b_pad = _round_up(B, bt)

    # ---- glue: layouts, padding, bf16 casts ------------------------------
    x_flat = jnp.transpose(x_feat, (0, 2, 3, 1)).reshape(B, HW, C)
    x_flat = jnp.pad(x_flat, ((0, b_pad - B), (0, hw_pad - HW), (0, 0)))
    x_flat = x_flat.astype(jnp.bfloat16)

    w_t = jnp.transpose(add_on_w.reshape(D, C), (1, 0))               # (C, D)
    w_t = jnp.pad(w_t, ((0, 0), (0, d_pad - D))).astype(jnp.bfloat16)  # (C, D_pad)
    # Padded D columns get a large negative bias so sigmoid() is exactly 0 there
    # (zero bias would give sigmoid(0)=0.5 and corrupt ||z||^2).
    b_row = jnp.pad(add_on_b.astype(jnp.float32), (0, d_pad - D),
                    constant_values=-1e9).reshape(1, d_pad)

    protos = prototypes.reshape(P, D).astype(jnp.float32)
    p2_row = jnp.pad(jnp.sum(protos * protos, axis=1),
                     (0, p_pad - P)).reshape(1, p_pad)                 # hoisted
    # Pre-transposed in HBM: no per-step XLU relayout of a constant operand.
    protos_t = jnp.pad(protos, ((0, p_pad - P), (0, d_pad - D))).T     # (D_pad, P_pad)
    protos_t = protos_t.astype(jnp.bfloat16)

    grid = (b_pad // bt,)

    grid_spec = pltpu.PrefetchScalarGridSpec(
        num_scalar_prefetch=0,
        grid=grid,
        in_specs=[
            pl.BlockSpec((bt, hw_pad, C), lambda b: (b, 0, 0)),
            pl.BlockSpec((C, d_pad), lambda b: (0, 0)),
            pl.BlockSpec((1, d_pad), lambda b: (0, 0)),
            pl.BlockSpec((d_pad, p_pad), lambda b: (0, 0)),
            pl.BlockSpec((1, p_pad), lambda b: (0, 0)),
        ],
        out_specs=[
            pl.BlockSpec((bt, hw_pad, p_pad), lambda b: (b, 0, 0)),
            pl.BlockSpec((bt, 1, p_pad), lambda b: (b, 0, 0)),
            pl.BlockSpec((bt, 1, p_pad), lambda b: (b, 0, 0)),
        ],
    )

    cost = pl.CostEstimate(
        flops=2 * b_pad * hw_pad * (C * d_pad + d_pad * p_pad),
        transcendentals=b_pad * hw_pad * d_pad,
        bytes_accessed=(x_flat.size * 2 + w_t.size * 2 + b_row.size * 4
                        + protos_t.size * 2 + p2_row.size * 4
                        + b_pad * hw_pad * p_pad * dist_bytes
                        + 2 * b_pad * p_pad * 4),
    )

    dist_flat, min_d, avg_d = pl.pallas_call(
        functools.partial(_proto_kernel, hw_real=HW),
        out_shape=(
            jax.ShapeDtypeStruct((b_pad, hw_pad, p_pad), distances_dtype),
            jax.ShapeDtypeStruct((b_pad, 1, p_pad), jnp.float32),
            jax.ShapeDtypeStruct((b_pad, 1, p_pad), jnp.float32),
        ),
        grid_spec=grid_spec,
        compiler_params=pltpu.CompilerParams(
            dimension_semantics=("parallel",),
            vmem_limit_bytes=int(vmem_limit)),
        cost_estimate=cost,
    )(x_flat, w_t, b_row, protos_t, p2_row)

    # ---- glue: strip padding, back to PyTorch layouts --------------------
    dist = dist_flat[:B, :HW, :P].reshape(B, H, W, P)
    distances = jnp.transpose(dist, (0, 3, 1, 2))          # (B, P, H, W)
    min_distances = min_d[:B, 0, :P]                       # == -maxpool(-d)
    avg_dist = avg_d[:B, 0, :P]                            # == avgpool(d)
    return avg_dist, min_distances, distances


def _init_params(key, c_feat, proto_depth, num_protos_total):
    """Deterministic parameter init matching the module's __init__."""
    k_w, k_p = jax.random.split(key)
    # kaiming_normal_(mode='fan_out', nonlinearity='relu') for a 1x1 conv:
    # fan_out = out_channels * kh * kw = proto_depth; std = sqrt(2 / fan_out)
    std = (2.0 / proto_depth) ** 0.5
    add_on_w = std * jax.random.normal(
        k_w, (proto_depth, c_feat, 1, 1), dtype=jnp.float32)
    add_on_b = jnp.zeros((proto_depth,), dtype=jnp.float32)
    # prototype_vectors = torch.rand(...)  -> uniform [0, 1)
    prototypes = jax.random.uniform(
        k_p, (num_protos_total, proto_depth, 1, 1), dtype=jnp.float32)
    return add_on_w, add_on_b, prototypes


if __name__ == "__main__":
    # Small shapes: batch=2, backbone feature channels=32, spatial 8x8,
    # proto_depth=32, num_prototypes=10 + 2 extra = 12 total.
    B, C_FEAT, H, W = 2, 32, 8, 8
    PROTO_DEPTH = 32
    NUM_PROTOTYPES, NUM_EXTRA = 10, 2
    P_TOTAL = NUM_PROTOTYPES + NUM_EXTRA

    key = jax.random.PRNGKey(0)
    k_x, k_params = jax.random.split(key)

    # Backbone feature map stand-in (output of self.features), NCHW.
    x_feat = jax.random.normal(k_x, (B, C_FEAT, H, W), dtype=jnp.float32)
    mask_lab = jnp.array([1, 0], dtype=jnp.int32)  # accepted, unused

    add_on_w, add_on_b, prototypes = _init_params(
        k_params, C_FEAT, PROTO_DEPTH, P_TOTAL)

    fwd = jax.jit(prototype_chooser_forward)
    avg_dist, min_distances, distances = fwd(
        x_feat, mask_lab, add_on_w, add_on_b, prototypes)
    jax.block_until_ready((avg_dist, min_distances, distances))

    # ---- sanity check against a pure-JAX reference that uses the same
    # ---- bf16-operand / f32-accumulate matmul precision as the kernel.
    w_mat = add_on_w.reshape(PROTO_DEPTH, C_FEAT)
    x_nhwc = jnp.transpose(x_feat, (0, 2, 3, 1))
    z_ref = jax.nn.sigmoid(
        jnp.einsum("bhwc,dc->bhwd",
                   x_nhwc.astype(jnp.bfloat16), w_mat.astype(jnp.bfloat16),
                   preferred_element_type=jnp.float32)
        + add_on_b[None, None, None, :])
    p_mat = prototypes.reshape(P_TOTAL, PROTO_DEPTH)
    z2_ref = jnp.sum(z_ref * z_ref, axis=-1)
    xp_ref = jnp.einsum("bhwd,pd->bhwp",
                        z_ref.astype(jnp.bfloat16),
                        p_mat.astype(jnp.bfloat16),
                        preferred_element_type=jnp.float32)
    d_ref = jnp.maximum(
        z2_ref[..., None] - 2.0 * xp_ref
        + jnp.sum(p_mat * p_mat, axis=1)[None, None, None, :], 0.0)
    d_ref = jnp.transpose(d_ref, (0, 3, 1, 2))              # (B, P, H, W)

    assert jnp.allclose(distances, d_ref, atol=1e-4, rtol=1e-4)
    assert jnp.allclose(min_distances, jnp.min(d_ref, axis=(2, 3)), atol=1e-4)
    assert jnp.allclose(avg_dist, jnp.mean(d_ref, axis=(2, 3)), atol=1e-4)
    assert avg_dist.shape == (B, P_TOTAL)
    assert min_distances.shape == (B, P_TOTAL)
    assert distances.shape == (B, P_TOTAL, H, W)

    print("KERNEL_OK")
</pallas_src>

<mosaic_0001>
module attributes {stable_mosaic.version = 11 : i64} {
  func.func @_proto_kernel(%arg0: i32, %arg1: memref<1x64x32xbf16, #tpu.memory_space<vmem>>, %arg2: memref<32x128xbf16, #tpu.memory_space<vmem>>, %arg3: memref<1x128xf32, #tpu.memory_space<vmem>>, %arg4: memref<128x128xbf16, #tpu.memory_space<vmem>>, %arg5: memref<1x128xf32, #tpu.memory_space<vmem>>, %arg6: memref<1x64x128xf32, #tpu.memory_space<vmem>>, %arg7: memref<1x1x128xf32, #tpu.memory_space<vmem>>, %arg8: memref<1x1x128xf32, #tpu.memory_space<vmem>>) attributes {dimension_semantics = [#tpu.dimension_semantics<parallel>], iteration_bounds = array<i64: 2>, scalar_prefetch = 0 : i64, scratch_operands = 0 : i64, tpu.core_type = #tpu.core_type<tc>, window_params = [{transform_indices = @transform_0, window_bounds = array<i64: 1, 64, 32>}, {pipeline_mode = #tpu.pipeline_mode<synchronous>, transform_indices = @transform_1, window_bounds = array<i64: 32, 128>}, {pipeline_mode = #tpu.pipeline_mode<synchronous>, transform_indices = @transform_2, window_bounds = array<i64: 1, 128>}, {pipeline_mode = #tpu.pipeline_mode<synchronous>, transform_indices = @transform_3, window_bounds = array<i64: 128, 128>}, {pipeline_mode = #tpu.pipeline_mode<synchronous>, transform_indices = @transform_4, window_bounds = array<i64: 1, 128>}, {transform_indices = @transform_5, window_bounds = array<i64: 1, 64, 128>}, {transform_indices = @transform_6, window_bounds = array<i64: 1, 1, 128>}, {transform_indices = @transform_7, window_bounds = array<i64: 1, 1, 128>}]} {
    %c0 = arith.constant 0 : index
    %c0_0 = arith.constant 0 : index
    %c0_1 = arith.constant 0 : index
    %0 = vector.load %arg1[%c0, %c0_0, %c0_1] : memref<1x64x32xbf16, #tpu.memory_space<vmem>>, vector<1x64x32xbf16>
    %1 = vector.shape_cast %0 : vector<1x64x32xbf16> to vector<64x32xbf16>
    %c0_2 = arith.constant 0 : index
    %c0_3 = arith.constant 0 : index
    %2 = vector.load %arg2[%c0_2, %c0_3] : memref<32x128xbf16, #tpu.memory_space<vmem>>, vector<32x128xbf16>
    %cst = arith.constant dense<0.000000e+00> : vector<64x128xf32>
    %3 = tpu.matmul %1, %2, %cst {dimension_numbers = #tpu.dot_dimension_numbers<[1], [0], [0], [1], [0, 0, 1, 1], [], []>} : vector<64x32xbf16>, vector<32x128xbf16>, vector<64x128xf32> -> vector<64x128xf32>
    %c0_4 = arith.constant 0 : index
    %c0_5 = arith.constant 0 : index
    %4 = vector.load %arg3[%c0_4, %c0_5] : memref<1x128xf32, #tpu.memory_space<vmem>>, vector<1x128xf32>
    %5 = vector.broadcast %4 : vector<1x128xf32> to vector<64x128xf32>
    %6 = arith.addf %3, %5 : vector<64x128xf32>
    %7 = arith.negf %6 : vector<64x128xf32>
    %8 = math.exp %7 : vector<64x128xf32>
    %cst_6 = arith.constant 1.000000e+00 : f32
    %9 = vector.broadcast %cst_6 : f32 to vector<64x128xf32>
    %10 = arith.addf %9, %8 : vector<64x128xf32>
    %11 = arith.divf %9, %10 : vector<64x128xf32>
    %12 = arith.mulf %11, %11 : vector<64x128xf32>
    %cst_7 = arith.constant dense<0.000000e+00> : vector<64xf32>
    %13 = vector.multi_reduction <add>, %12, %cst_7 [1] : vector<64x128xf32> to vector<64xf32>
    %14 = vector.shape_cast %13 : vector<64xf32> to vector<64x1xf32>
    %15 = arith.truncf %11 : vector<64x128xf32> to vector<64x128xbf16>
    %c0_8 = arith.constant 0 : index
    %c0_9 = arith.constant 0 : index
    %16 = vector.load %arg4[%c0_8, %c0_9] : memref<128x128xbf16, #tpu.memory_space<vmem>>, vector<128x128xbf16>
    %cst_10 = arith.constant dense<0.000000e+00> : vector<64x128xf32>
    %17 = tpu.matmul %15, %16, %cst_10 {dimension_numbers = #tpu.dot_dimension_numbers<[1], [0], [0], [1], [0, 0, 1, 1], [], []>} : vector<64x128xbf16>, vector<128x128xbf16>, vector<64x128xf32> -> vector<64x128xf32>
    %cst_11 = arith.constant 2.000000e+00 : f32
    %18 = vector.broadcast %cst_11 : f32 to vector<64x128xf32>
    %19 = arith.mulf %18, %17 : vector<64x128xf32>
    %20 = vector.broadcast %14 : vector<64x1xf32> to vector<64x128xf32>
    %21 = arith.subf %20, %19 : vector<64x128xf32>
    %c0_12 = arith.constant 0 : index
    %c0_13 = arith.constant 0 : index
    %22 = vector.load %arg5[%c0_12, %c0_13] : memref<1x128xf32, #tpu.memory_space<vmem>>, vector<1x128xf32>
    %23 = vector.broadcast %22 : vector<1x128xf32> to vector<64x128xf32>
    %24 = arith.addf %21, %23 : vector<64x128xf32>
    %cst_14 = arith.constant 0.000000e+00 : f32
    %25 = vector.broadcast %cst_14 : f32 to vector<64x128xf32>
    %26 = arith.maximumf %24, %25 : vector<64x128xf32>
    %27 = vector.shape_cast %26 : vector<64x128xf32> to vector<1x64x128xf32>
    %c0_15 = arith.constant 0 : index
    %c0_16 = arith.constant 0 : index
    %c0_17 = arith.constant 0 : index
    %28 = vector.load %arg6[%c0_15, %c0_16, %c0_17] : memref<1x64x128xf32, #tpu.memory_space<vmem>>, vector<1x64x128xf32>
    tpu.vector_store %arg6[%c0_15, %c0_16, %c0_17], %27 {strides = array<i32>} : memref<1x64x128xf32, #tpu.memory_space<vmem>>, vector<1x64x128xf32>,
    %cst_18 = arith.constant dense<0x7F800000> : vector<1x128xf32>
    %29 = vector.multi_reduction <minimumf>, %27, %cst_18 [1] : vector<1x64x128xf32> to vector<1x128xf32>
    %30 = vector.shape_cast %29 : vector<1x128xf32> to vector<1x1x128xf32>
    %c0_19 = arith.constant 0 : index
    %c0_20 = arith.constant 0 : index
    %c0_21 = arith.constant 0 : index
    %31 = vector.load %arg7[%c0_19, %c0_20, %c0_21] : memref<1x1x128xf32, #tpu.memory_space<vmem>>, vector<1x1x128xf32>
    tpu.vector_store %arg7[%c0_19, %c0_20, %c0_21], %30 {strides = array<i32>} : memref<1x1x128xf32, #tpu.memory_space<vmem>>, vector<1x1x128xf32>,
    %cst_22 = arith.constant dense<0.000000e+00> : vector<1x128xf32>
    %32 = vector.multi_reduction <add>, %27, %cst_22 [1] : vector<1x64x128xf32> to vector<1x128xf32>
    %33 = vector.shape_cast %32 : vector<1x128xf32> to vector<1x1x128xf32>
    %cst_23 = arith.constant 1.562500e-02 : f32
    %34 = vector.broadcast %cst_23 : f32 to vector<1x1x128xf32>
    %35 = arith.mulf %33, %34 : vector<1x1x128xf32>
    %c0_24 = arith.constant 0 : index
    %c0_25 = arith.constant 0 : index
    %c0_26 = arith.constant 0 : index
    %36 = vector.load %arg8[%c0_24, %c0_25, %c0_26] : memref<1x1x128xf32, #tpu.memory_space<vmem>>, vector<1x1x128xf32>
    tpu.vector_store %arg8[%c0_24, %c0_25, %c0_26], %35 {strides = array<i32>} : memref<1x1x128xf32, #tpu.memory_space<vmem>>, vector<1x1x128xf32>,
    return
  }
  func.func @transform_0(%arg0: i32) -> (i32, i32, i32) {
    %c0_i32 = arith.constant 0 : i32
    %c0_i32_0 = arith.constant 0 : i32
    %c0_i32_1 = arith.constant 0 : i32
    return %arg0, %c0_i32, %c0_i32_0 : i32, i32, i32
  }
  func.func @transform_1(%arg0: i32) -> (i32, i32) {
    %c0_i32 = arith.constant 0 : i32
    %c0_i32_0 = arith.constant 0 : i32
    %c0_i32_1 = arith.constant 0 : i32
    return %c0_i32, %c0_i32_0 : i32, i32
  }
  func.func @transform_2(%arg0: i32) -> (i32, i32) {
    %c0_i32 = arith.constant 0 : i32
    %c0_i32_0 = arith.constant 0 : i32
    %c0_i32_1 = arith.constant 0 : i32
    return %c0_i32, %c0_i32_0 : i32, i32
  }
  func.func @transform_3(%arg0: i32) -> (i32, i32) {
    %c0_i32 = arith.constant 0 : i32
    %c0_i32_0 = arith.constant 0 : i32
    %c0_i32_1 = arith.constant 0 : i32
    return %c0_i32, %c0_i32_0 : i32, i32
  }
  func.func @transform_4(%arg0: i32) -> (i32, i32) {
    %c0_i32 = arith.constant 0 : i32
    %c0_i32_0 = arith.constant 0 : i32
    %c0_i32_1 = arith.constant 0 : i32
    return %c0_i32, %c0_i32_0 : i32, i32
  }
  func.func @transform_5(%arg0: i32) -> (i32, i32, i32) {
    %c0_i32 = arith.constant 0 : i32
    %c0_i32_0 = arith.constant 0 : i32
    %c0_i32_1 = arith.constant 0 : i32
    return %arg0, %c0_i32, %c0_i32_0 : i32, i32, i32
  }
  func.func @transform_6(%arg0: i32) -> (i32, i32, i32) {
    %c0_i32 = arith.constant 0 : i32
    %c0_i32_0 = arith.constant 0 : i32
    %c0_i32_1 = arith.constant 0 : i32
    return %arg0, %c0_i32, %c0_i32_0 : i32, i32, i32
  }
  func.func @transform_7(%arg0: i32) -> (i32, i32, i32) {
    %c0_i32 = arith.constant 0 : i32
    %c0_i32_0 = arith.constant 0 : i32
    %c0_i32_1 = arith.constant 0 : i32
    return %arg0, %c0_i32, %c0_i32_0 : i32, i32, i32
  }
}

</mosaic_0001>

<llo_original>
// kernel: prototype_chooser_forward.1
$region0: #{prototype_chooser_forward.1}
  #allocation0 [shape = 'u32[]', space=smem, size = 0x4, offset = 0x4, fixed_abs, tag = 'smem constant byte address 0x4 - core index']
  #allocation1 [shape = 'u32[144,128]{1,0:T(1,128)}', space=vmem, size = 0x12000, scoped, tag = 'internal scratch']
  %s0 = inlined_call_operand.vmem [shape: bf16[2,64,32], index: 0, kind: input, shape index: {}]
  %s1 = inlined_call_operand.vmem [shape: bf16[32,128], index: 1, kind: input, shape index: {}]
  %s2 = inlined_call_operand.vmem [shape: f32[1,128], index: 2, kind: input, shape index: {}]
  %s3 = inlined_call_operand.vmem [shape: bf16[128,128], index: 3, kind: input, shape index: {}]
  %s4 = inlined_call_operand.vmem [shape: f32[1,128], index: 4, kind: input, shape index: {}]
  %s5 = inlined_call_operand.vmem [shape: f32[2,64,128], index: 5, kind: output, shape index: {0}]
  %s6 = inlined_call_operand.hbm [shape: f32[2,1,128], index: 6, kind: output, shape index: {1}]
  %s7 = inlined_call_operand.hbm [shape: f32[2,1,128], index: 7, kind: output, shape index: {2}]
  %8 = xla_tuple %s5, %s6, %s7
  %s9 = sld [smem:[#allocation0]]
  $region69: #{prototype_chooser_forward.1} parent=0
    _
  %s11 = ssub.s32 1, %s9
  %s12 = scalar_select 0, %s11, %s9
  $region1: #{prototype_chooser_forward.1} parent=0
    #allocation2 [shape = 'u8[1024]{0}', space=vmem, size = 0x400, scoped, tag = 'output window, operand 1']
    #allocation3 [shape = 's32[2]{0}', space=sflag, size = 0x8, scoped, tag = 'scoped memory for prototype_chooser_forward.1']
    #allocation4 [shape = 'u8[1024]{0}', space=vmem, size = 0x400, scoped, tag = 'output window, operand 2']
    #allocation5 [shape = 's32[2]{0}', space=sflag, size = 0x8, scoped, tag = 'scoped memory for prototype_chooser_forward.1']
    %13 = vsyncpa [#allocation3], 0
    %s14 = scalar_lea.sflag [#allocation3], 1
    %15 = vsyncpa %s14, 0
    %16 = vsyncpa [#allocation5], 0
    %s17 = scalar_lea.sflag [#allocation5], 1
    %18 = vsyncpa %s17, 0
    loop: start=0, step=1, limit=4
    $region2: #{prototype_chooser_forward.1} parent=1 // loop_pre_header
      _
    $region3: #{prototype_chooser_forward.1} parent=1 // loop_header
      %s20 = sphi 0, %s24
      %p21 = scmp.ge.s32.totalorder %s20, 4
      %s30 = sphi 0, %s32
      %s33 = sphi 0, %s30
      %s34 = sphi 0, %s33
      %s50 = sphi 0, %s34
      %s54 = sphi 0, %s54
      %s56 = sphi 0, %s54
      %s57 = sphi 0, %s56
      %s71 = sphi 0, %s57
      %s75 = sphi 0, %s75
      %s77 = sphi 0, %s75
      %s78 = sphi 0, %s77
      %s92 = sphi 0, %s78
      %s96 = sphi 0, %s96
      %s98 = sphi 0, %s96
      %s99 = sphi 0, %s98
      %s113 = sphi 0, %s99
      %s117 = sphi 0, %s117
      %s119 = sphi 0, %s117
      %s120 = sphi 0, %s119
      %s134 = sphi 0, %s120
      %s140 = sphi 0, %s142
      %s143 = sphi 0, %s140
      %s144 = sphi 0, %s143
      %s160 = sphi 0, %s144
      %s166 = sphi 0, %s168
      %s169 = sphi 0, %s166
      %s170 = sphi 0, %s169
      %s186 = sphi 0, %s170
      %s192 = sphi 0, %s194
      %s195 = sphi 0, %s192
      %s196 = sphi 0, %s195
      %s212 = sphi 0, %s196
    $region4: #{prototype_chooser_forward.1} parent=1 // loop_header_branch
      %23 = sbr.rel (%p21) target = $region8
    $region5: #{prototype_chooser_forward.1} parent=1 // loop_body
      %s25 = ssub.s32 %s20, 1
      %s26 = ssub.s32 %s20, 2
      %s27 = sadd.s32 %s20, 1
      %s28 = ssub.s32 %s20, %s27
      %p29 = scmp.eq.s32.totalorder %s28, 0
      %s31 = sadd.s32 %s30, 1
      %s32 = scalar_select %p29, %s30, %s31
      %p35 = pneg %p29
      %p36 = scmp.eq.s32.totalorder %s20, 1
      %p37 = por %p35, %p36
      %p38 = scmp.ne.s32.totalorder %s30, %s33
      %p39 = scmp.eq.s32.totalorder %s20, 0
      %p40 = por %p38, %p39
      %p41 = scmp.ne.s32.totalorder %s30, %s33
      %p42 = scmp.eq.s32.totalorder %s25, 1
      %p43 = por %p41, %p42
      %p44 = scmp.ne.s32.totalorder %s33, %s34
      %p45 = scmp.eq.s32.totalorder %s25, 0
      %p46 = por %p44, %p45
      %p47 = scmp.ne.s32.totalorder %s33, %s34
      %p48 = scmp.eq.s32.totalorder %s26, 1
      %p49 = por %p47, %p48
      %p51 = scmp.ne.s32.totalorder %s34, %s50
      %p52 = scmp.eq.s32.totalorder %s26, 0
      %p53 = por %p51, %p52
      %s55 = sadd.s32 %s54, 1
      %p58 = scmp.eq.s32.totalorder %s20, 1
      %p59 = scmp.ne.s32.totalorder %s54, %s56
      %p60 = scmp.eq.s32.totalorder %s20, 0
      %p61 = por %p59, %p60
      %p62 = scmp.ne.s32.totalorder %s54, %s56
      %p63 = scmp.eq.s32.totalorder %s25, 1
      %p64 = por %p62, %p63
      %p65 = scmp.ne.s32.totalorder %s56, %s57
      %p66 = scmp.eq.s32.totalorder %s25, 0
      %p67 = por %p65, %p66
      %p68 = scmp.ne.s32.totalorder %s56, %s57
      %p69 = scmp.eq.s32.totalorder %s26, 1
      %p70 = por %p68, %p69
      %p72 = scmp.ne.s32.totalorder %s57, %s71
      %p73 = scmp.eq.s32.totalorder %s26, 0
      %p74 = por %p72, %p73
      %s76 = sadd.s32 %s75, 1
      %p79 = scmp.eq.s32.totalorder %s20, 1
      %p80 = scmp.ne.s32.totalorder %s75, %s77
      %p81 = scmp.eq.s32.totalorder %s20, 0
      %p82 = por %p80, %p81
      %p83 = scmp.ne.s32.totalorder %s75, %s77
      %p84 = scmp.eq.s32.totalorder %s25, 1
      %p85 = por %p83, %p84
      %p86 = scmp.ne.s32.totalorder %s77, %s78
      %p87 = scmp.eq.s32.totalorder %s25, 0
      %p88 = por %p86, %p87
      %p89 = scmp.ne.s32.totalorder %s77, %s78
      %p90 = scmp.eq.s32.totalorder %s26, 1
      %p91 = por %p89, %p90
      %p93 = scmp.ne.s32.totalorder %s78, %s92
      %p94 = scmp.eq.s32.totalorder %s26, 0
      %p95 = por %p93, %p94
      %s97 = sadd.s32 %s96, 1
      %p100 = scmp.eq.s32.totalorder %s20, 1
      %p101 = scmp.ne.s32.totalorder %s96, %s98
      %p102 = scmp.eq.s32.totalorder %s20, 0
      %p103 = por %p101, %p102
      %p104 = scmp.ne.s32.totalorder %s96, %s98
      %p105 = scmp.eq.s32.totalorder %s25, 1
      %p106 = por %p104, %p105
      %p107 = scmp.ne.s32.totalorder %s98, %s99
      %p108 = scmp.eq.s32.totalorder %s25, 0
      %p109 = por %p107, %p108
      %p110 = scmp.ne.s32.totalorder %s98, %s99
      %p111 = scmp.eq.s32.totalorder %s26, 1
      %p112 = por %p110, %p111
      %p114 = scmp.ne.s32.totalorder %s99, %s113
      %p115 = scmp.eq.s32.totalorder %s26, 0
      %p116 = por %p114, %p115
      %s118 = sadd.s32 %s117, 1
      %p121 = scmp.eq.s32.totalorder %s20, 1
      %p122 = scmp.ne.s32.totalorder %s117, %s119
      %p123 = scmp.eq.s32.totalorder %s20, 0
      %p124 = por %p122, %p123
      %p125 = scmp.ne.s32.totalorder %s117, %s119
      %p126 = scmp.eq.s32.totalorder %s25, 1
      %p127 = por %p125, %p126
      %p128 = scmp.ne.s32.totalorder %s119, %s120
      %p129 = scmp.eq.s32.totalorder %s25, 0
      %p130 = por %p128, %p129
      %p131 = scmp.ne.s32.totalorder %s119, %s120
      %p132 = scmp.eq.s32.totalorder %s26, 1
      %p133 = por %p131, %p132
      %p135 = scmp.ne.s32.totalorder %s120, %s134
      %p136 = scmp.eq.s32.totalorder %s26, 0
      %p137 = por %p135, %p136
      %s138 = ssub.s32 %s20, %s27
      %p139 = scmp.eq.s32.totalorder %s138, 0
      %s141 = sadd.s32 %s140, 1
      %s142 = scalar_select %p139, %s140, %s141
      %p145 = pneg %p139
      %p146 = scmp.eq.s32.totalorder %s20, 1
      %p147 = por %p145, %p146
      %p148 = scmp.ne.s32.totalorder %s140, %s143
      %p149 = scmp.eq.s32.totalorder %s20, 0
      %p150 = por %p148, %p149
      %p151 = scmp.ne.s32.totalorder %s140, %s143
      %p152 = scmp.eq.s32.totalorder %s25, 1
      %p153 = por %p151, %p152
      %p154 = scmp.ne.s32.totalorder %s143, %s144
      %p155 = scmp.eq.s32.totalorder %s25, 0
      %p156 = por %p154, %p155
      %p157 = scmp.ne.s32.totalorder %s143, %s144
      %p158 = scmp.eq.s32.totalorder %s26, 1
      %p159 = por %p157, %p158
      %p161 = scmp.ne.s32.totalorder %s144, %s160
      %p162 = scmp.eq.s32.totalorder %s26, 0
      %p163 = por %p161, %p162
      %s164 = ssub.s32 %s20, %s27
      %p165 = scmp.eq.s32.totalorder %s164, 0
      %s167 = sadd.s32 %s166, 1
      %s168 = scalar_select %p165, %s166, %s167
      %p171 = pneg %p165
      %p172 = scmp.eq.s32.totalorder %s20, 1
      %p173 = por %p171, %p172
      %p174 = scmp.ne.s32.totalorder %s166, %s169
      %p175 = scmp.eq.s32.totalorder %s20, 0
      %p176 = por %p174, %p175
      %p177 = scmp.ne.s32.totalorder %s166, %s169
      %p178 = scmp.eq.s32.totalorder %s25, 1
      %p179 = por %p177, %p178
      %p180 = scmp.ne.s32.totalorder %s169, %s170
      %p181 = scmp.eq.s32.totalorder %s25, 0
      %p182 = por %p180, %p181
      %p183 = scmp.ne.s32.totalorder %s169, %s170
      %p184 = scmp.eq.s32.totalorder %s26, 1
      %p185 = por %p183, %p184
      %p187 = scmp.ne.s32.totalorder %s170, %s186
      %p188 = scmp.eq.s32.totalorder %s26, 0
      %p189 = por %p187, %p188
      %s190 = ssub.s32 %s20, %s27
      %p191 = scmp.eq.s32.totalorder %s190, 0
      %s193 = sadd.s32 %s192, 1
      %s194 = scalar_select %p191, %s192, %s193
      %p197 = pneg %p191
      %p198 = scmp.eq.s32.totalorder %s20, 1
      %p199 = por %p197, %p198
      %p200 = scmp.ne.s32.totalorder %s192, %s195
      %p201 = scmp.eq.s32.totalorder %s20, 0
      %p202 = por %p200, %p201
      %p203 = scmp.ne.s32.totalorder %s192, %s195
      %p204 = scmp.eq.s32.totalorder %s25, 1
      %p205 = por %p203, %p204
      %p206 = scmp.ne.s32.totalorder %s195, %s196
      %p207 = scmp.eq.s32.totalorder %s25, 0
      %p208 = por %p206, %p207
      %p209 = scmp.ne.s32.totalorder %s195, %s196
      %p210 = scmp.eq.s32.totalorder %s26, 1
      %p211 = por %p209, %p210
      %p213 = scmp.ne.s32.totalorder %s196, %s212
      %p214 = scmp.eq.s32.totalorder %s26, 0
      %p215 = por %p213, %p214
      %p216 = scmp.le.s32.totalorder 1, %s20
      %p217 = scmp.lt.s32.totalorder %s20, 3
      %p218 = pnand %p216, %p217
      %p219 = pneg %p218
      // Predicated region
      $region9: #{prototype_chooser_forward.1} parent=5 // pred_check
        _
      $region10: #{prototype_chooser_forward.1} parent=5 // pred_check_branch
        %221 = sbr.rel (%p218) target = $region12
      $region11: #{prototype_chooser_forward.1} parent=5 // pred_region
        %s222 = ssub.s32 %s20, 1
        // Predicated region
        $region13: #{prototype_chooser_forward.1} parent=11 // pred_check
          %p223 = pneg %p67
        $region14: #{prototype_chooser_forward.1} parent=11 // pred_check_branch
          %225 = sbr.rel (%p223) target = $region16
        $region15: #{prototype_chooser_forward.1} parent=11 // pred_region
          _
        $region16: #{prototype_chooser_forward.1} parent=11 // pred_fallthru
          _
        // Predicated region
        $region17: #{prototype_chooser_forward.1} parent=11 // pred_check
          %p226 = pneg %p88
        $region18: #{prototype_chooser_forward.1} parent=11 // pred_check_branch
          %228 = sbr.rel (%p226) target = $region20
        $region19: #{prototype_chooser_forward.1} parent=11 // pred_region
          _
        $region20: #{prototype_chooser_forward.1} parent=11 // pred_fallthru
          _
        // Predicated region
        $region21: #{prototype_chooser_forward.1} parent=11 // pred_check
          %p229 = pneg %p109
        $region22: #{prototype_chooser_forward.1} parent=11 // pred_check_branch
          %231 = sbr.rel (%p229) target = $region24
        $region23: #{prototype_chooser_forward.1} parent=11 // pred_region
          _
        $region24: #{prototype_chooser_forward.1} parent=11 // pred_fallthru
          _
        // Predicated region
        $region25: #{prototype_chooser_forward.1} parent=11 // pred_check
          %p232 = pneg %p130
        $region26: #{prototype_chooser_forward.1} parent=11 // pred_check_branch
          %234 = sbr.rel (%p232) target = $region28
        $region27: #{prototype_chooser_forward.1} parent=11 // pred_region
          _
        $region28: #{prototype_chooser_forward.1} parent=11 // pred_fallthru
          _
      $region12: #{prototype_chooser_forward.1} parent=5 // pred_fallthru
        _
      %p235 = scmp.lt.s32.totalorder %s20, 2
      // Predicated region
      $region29: #{prototype_chooser_forward.1} parent=5 // pred_check
        %p236 = pneg %p235
      $region30: #{prototype_chooser_forward.1} parent=5 // pred_check_branch
        %238 = sbr.rel (%p236) target = $region32
      $region31: #{prototype_chooser_forward.1} parent=5 // pred_region
        // Predicated region
        $region33: #{prototype_chooser_forward.1} parent=31 // pred_check
          %p239 = pneg %p40
        $region34: #{prototype_chooser_forward.1} parent=31 // pred_check_branch
          %241 = sbr.rel (%p239) target = $region36
        $region35: #{prototype_chooser_forward.1} parent=31 // pred_region
          %p242 = scmp.lt.s32.totalorder %s20, 1
          %s243 = scalar_select %p242, %s20, 1
          %s244 = smul.addr %s243, 8
          %s245 = smul.addr %s244, 4
          %s246 = scalar_lea.vmem %s0, %s245
        $region36: #{prototype_chooser_forward.1} parent=31 // pred_fallthru
          _
      $region32: #{prototype_chooser_forward.1} parent=5 // pred_fallthru
        _
      %p247 = scmp.le.s32.totalorder 1, %s20
      %p248 = scmp.lt.s32.totalorder %s20, 3
      %p249 = pnand %p247, %p248
      %p250 = pneg %p249
      // Predicated region
      $region37: #{prototype_chooser_forward.1} parent=5 // pred_check
        _
      $region38: #{prototype_chooser_forward.1} parent=5 // pred_check_branch
        %252 = sbr.rel (%p249) target = $region40
      $region39: #{prototype_chooser_forward.1} parent=5 // pred_region
        %s253 = ssub.s32 %s20, 1
        %p254 = scmp.lt.s32.totalorder %s25, 1
        %s255 = scalar_select %p254, %s25, 1
        %s256 = smul.addr %s255, 8
        %s257 = smul.addr %s256, 4
        %s258 = scalar_lea.vmem %s0, %s257
        %p259 = pneg %p46
        %p260 = pneg %p43
        %p261 = pneg %p67
        %p262 = pneg %p64
        %p263 = pneg %p88
        %p264 = pneg %p85
        %p265 = pneg %p109
        %p266 = pneg %p106
        %p267 = pneg %p130
        %p268 = pneg %p127
        %p269 = pneg %p156
        %p270 = pneg %p153
        %p271 = scmp.lt.s32.totalorder %s25, 1
        %s272 = scalar_select %p271, %s25, 1
        %s273 = smul.addr %s272, 8
        %s274 = smul.addr %s273, 8
        %s275 = scalar_lea.vmem %s5, %s274
        %p276 = pneg %p182
        %p277 = pneg %p179
        %s278 = sand.u32 %s169, 1
        %s279 = scalar_lea.sflag [#allocation3], %s278
        %s280 = sand.u32 %s169, 1
        %s281 = scalar_lea.vmem [#allocation2], %s280
        %p282 = pneg %p208
        %p283 = pneg %p205
        %s284 = sand.u32 %s195, 1
        %s285 = scalar_lea.sflag [#allocation5], %s284
        %s286 = sand.u32 %s195, 1
        %s287 = scalar_lea.vmem [#allocation4], %s286
        %p288 = scmp.lt.s32.totalorder %s25, 1
        %s289 = scalar_select %p288, %s25, 1
        %s290 = smul.addr %s289, 8
        %s291 = smul.addr %s290, 4
        %s292 = scalar_lea.vmem %s0, %s291
        %p293 = scmp.lt.s32.totalorder %s25, 1
        %s294 = scalar_select %p293, %s25, 1
        %s295 = smul.addr %s294, 8
        %s296 = smul.addr %s295, 8
        %s297 = scalar_lea.vmem %s5, %s296
        %v299 = vld [vmem:[%s292] sm:$0xf]
        %v300 = vld [vmem:[%s292 + $0x4] sm:$0xf]
        %v301 = vld [vmem:[%s292 + $0x8] sm:$0xf]
        %v302 = vld [vmem:[%s292 + $0xc] sm:$0xf]
        %v303 = vld [vmem:[%s292 + $0x10] sm:$0xf]
        %v304 = vld [vmem:[%s292 + $0x14] sm:$0xf]
        %v305 = vld [vmem:[%s292 + $0x18] sm:$0xf]
        %v306 = vld [vmem:[%s292 + $0x1c] sm:$0xf]
        %v307 = vld [vmem:[%s1] sm:$0xf]
        %v308 = vld [vmem:[%s1 + $0x4] sm:$0xf]
        %v309 = vld [vmem:[%s1 + $0x8] sm:$0xf]
        %v310 = vld [vmem:[%s1 + $0xc] sm:$0xf]
        %v311 = vld [vmem:[%s2] sm:$0x1]
        %v313 = vlaneseq
        %v314 = vshrl.u32 %v313, 7
        %v315 = vsub.s32 0, %v314
        %v316 = vrot.slane %v311, %v315
        %v326 = vunpack.c.l.b16 %v299
        %v327 = vunpack.c.l.b16 %v300
        %v328 = vunpack.c.l.b16 %v301
        %v329 = vunpack.c.l.b16 %v302
        %v330 = vunpack.c.l.b16 %v303
        %v331 = vunpack.c.l.b16 %v304
        %v332 = vunpack.c.l.b16 %v305
        %v333 = vunpack.c.l.b16 %v306
        %v334 = vpack.c.b16 %v327, %v326
        %v335 = vpack.c.b16 %v329, %v328
        %v336 = vpack.c.b16 %v331, %v330
        %v337 = vpack.c.b16 %v333, %v332
        %v342 = vunpack.c.l.b16 %v307
        %v343 = vunpack.c.l.b16 %v308
        %v344 = vunpack.c.l.b16 %v309
        %v345 = vunpack.c.l.b16 %v310
        %v346 = vpack.c.b16 %v343, %v342
        %v347 = vpack.c.b16 %v345, %v344
        %vm350 = vcmask 261120
        %v352 = vsel %vm350, %v334, 0
        %v355 = vsel %vm350, %v335, 0
        %v358 = vsel %vm350, %v336, 0
        %v361 = vsel %vm350, %v337, 0
        %363 = vmatprep.subr.bf16.mxu0 0
        %364 = vmatpush1.bf16.msra.mxu0 %v346
        %365 = vmatprep.subr.bf16.mxu0 0
        %366 = vmatpush1.bf16.msra.mxu0 %v347
        %367 = vmatprep.subr.bf16.mxu0 0
        %368 = vmatpush1.bf16.msra.mxu0 0
        %369 = vmatprep.subr.bf16.mxu0 0
        %370 = vmatpush1.bf16.msra.mxu0 0
        %371 = vmatprep.subr.bf16.mxu0 0
        %372 = vmatpush1.bf16.msra.mxu0 0
        %373 = vmatprep.subr.bf16.mxu0 0
        %374 = vmatpush1.bf16.msra.mxu0 0
        %375 = vmatprep.subr.bf16.mxu0 0
        %376 = vmatpush1.bf16.msra.mxu0 0
        %377 = vmatprep.subr.bf16.mxu0 0
        %378 = vmatpush1.bf16.msra.mxu0 0
        %379 = vmatprep.subr.bf16.mxu0 0
        %380 = vmatpush1.bf16.msra.mxu0 0
        %381 = vmatprep.subr.bf16.mxu0 0
        %382 = vmatpush1.bf16.msra.mxu0 0
        %383 = vmatprep.subr.bf16.mxu0 0
        %384 = vmatpush1.bf16.msra.mxu0 0
        %385 = vmatprep.subr.bf16.mxu0 0
        %386 = vmatpush1.bf16.msra.mxu0 0
        %387 = vmatprep.subr.bf16.mxu0 0
        %388 = vmatpush1.bf16.msra.mxu0 0
        %389 = vmatprep.subr.bf16.mxu0 0
        %390 = vmatpush1.bf16.msra.mxu0 0
        %391 = vmatprep.subr.bf16.mxu0 0
        %392 = vmatpush1.bf16.msra.mxu0 0
        %393 = vmatprep.subr.bf16.mxu0 0
        %394 = vmatpush1.bf16.msra.mxu0 0
        %395 = vmatprep.mubr.bf16.mxu0 0
        %396 = vmatmul.mubr.bf16.gmra.mrb[0].mxu0 %v352
        %v397 = vpop.f32.mrb[0].mxu0
        %v398 = vadd.f32 %v316, %v397
        %v399 = vpop.f32.mrb[0].mxu0
        %v400 = vpop.f32.mrb[0].mxu0
        %v401 = vadd.f32 %v316, %v400
        %v402 = vpop.f32.mrb[0].mxu0
        %403 = vmatprep.mubr.bf16.mxu0 0
        %404 = vmatmul.mubr.bf16.gmra.mrb[0].mxu0 %v355
        %v405 = vpop.f32.mrb[0].mxu0
        %v406 = vadd.f32 %v316, %v405
        %v407 = vpop.f32.mrb[0].mxu0
        %v408 = vpop.f32.mrb[0].mxu0
        %v409 = vadd.f32 %v316, %v408
        %v410 = vpop.f32.mrb[0].mxu0
        %411 = vmatprep.mubr.bf16.mxu0 0
        %412 = vmatmul.mubr.bf16.gmra.mrb[0].mxu0 %v358
        %v413 = vpop.f32.mrb[0].mxu0
        %v414 = vadd.f32 %v316, %v413
        %v415 = vpop.f32.mrb[0].mxu0
        %v416 = vpop.f32.mrb[0].mxu0
        %v417 = vadd.f32 %v316, %v416
        %v418 = vpop.f32.mrb[0].mxu0
        %419 = vmatprep.mubr.bf16.mxu0 0
        %420 = vmatmul.mubr.bf16.gmra.mrb[0].mxu0 %v361
        %v421 = vpop.f32.mrb[0].mxu0
        %v422 = vadd.f32 %v316, %v421
        %v423 = vpop.f32.mrb[0].mxu0
        %v424 = vpop.f32.mrb[0].mxu0
        %v425 = vadd.f32 %v316, %v424
        %v426 = vpop.f32.mrb[0].mxu0
        %427 = vdwg.mxu0
        %v428 = vxor.u32 %v398, 2147483648
        %v429 = vxor.u32 %v401, 2147483648
        %v430 = vxor.u32 %v406, 2147483648
        %v431 = vxor.u32 %v409, 2147483648
        %v432 = vxor.u32 %v414, 2147483648
        %v433 = vxor.u32 %v417, 2147483648
        %v434 = vxor.u32 %v422, 2147483648
        %v435 = vxor.u32 %v425, 2147483648
        %v436 = vmul.f32 %v428, 1.442695
        %v437 = vpow.pop %v436
        %v438 = vmul.f32 %v429, 1.442695
        %v439 = vpow.pop %v438
        %v440 = vmul.f32 %v430, 1.442695
        %v441 = vpow.pop %v440
        %v442 = vmul.f32 %v431, 1.442695
        %v443 = vpow.pop %v442
        %v444 = vmul.f32 %v432, 1.442695
        %v445 = vpow.pop %v444
        %v446 = vmul.f32 %v433, 1.442695
        %v447 = vpow.pop %v446
        %v448 = vmul.f32 %v434, 1.442695
        %v449 = vpow.pop %v448
        %v450 = vmul.f32 %v435, 1.442695
        %v451 = vpow.pop %v450
        %v452 = vadd.f32 %v437, 1.0
        %v453 = vadd.f32 %v439, 1.0
        %v454 = vadd.f32 %v441, 1.0
        %v455 = vadd.f32 %v443, 1.0
        %v456 = vadd.f32 %v445, 1.0
        %v457 = vadd.f32 %v447, 1.0
        %v458 = vadd.f32 %v449, 1.0
        %v459 = vadd.f32 %v451, 1.0
        %v460 = vrcp.pop %v452
        %v461 = vmul.f32 1.0, %v460
        %v462 = vrcp.pop %v453
        %v463 = vmul.f32 1.0, %v462
        %v464 = vrcp.pop %v454
        %v465 = vmul.f32 1.0, %v464
        %v466 = vrcp.pop %v455
        %v467 = vmul.f32 1.0, %v466
        %v468 = vrcp.pop %v456
        %v469 = vmul.f32 1.0, %v468
        %v470 = vrcp.pop %v457
        %v471 = vmul.f32 1.0, %v470
        %v472 = vrcp.pop %v458
        %v473 = vmul.f32 1.0, %v472
        %v474 = vrcp.pop %v459
        %v475 = vmul.f32 1.0, %v474
        %v476 = vmul.f32 %v461, %v461
        %v477 = vmul.f32 %v463, %v463
        %v478 = vmul.f32 %v465, %v465
        %v479 = vmul.f32 %v467, %v467
        %v480 = vmul.f32 %v469, %v469
        %v481 = vmul.f32 %v471, %v471
        %v482 = vmul.f32 %v473, %v473
        %v483 = vmul.f32 %v475, %v475
        %484 = vadd.xlane.f32.xlu0 %v476
        %v485 = vpop.xlane.xlu0 %484
        %486 = vadd.xlane.f32.xlu0 %v477
        %v487 = vpop.xlane.xlu0 %486
        %488 = vadd.xlane.f32.xlu0 %v478
        %v489 = vpop.xlane.xlu0 %488
        %490 = vadd.xlane.f32.xlu0 %v479
        %v491 = vpop.xlane.xlu0 %490
        %492 = vadd.xlane.f32.xlu0 %v480
        %v493 = vpop.xlane.xlu0 %492
        %494 = vadd.xlane.f32.xlu0 %v481
        %v495 = vpop.xlane.xlu0 %494
        %496 = vadd.xlane.f32.xlu0 %v482
        %v497 = vpop.xlane.xlu0 %496
        %498 = vadd.xlane.f32.xlu0 %v483
        %v499 = vpop.xlane.xlu0 %498
        %v500 = vpack.c.bf16 %v463, %v461
        %v501 = vpack.c.bf16 %v467, %v465
        %v502 = vpack.c.bf16 %v471, %v469
        %v503 = vpack.c.bf16 %v475, %v473
        %v504 = vld [vmem:[%s3] sm:$0xf]
        %v505 = vld [vmem:[%s3 + $0x4] sm:$0xf]
        %v506 = vld [vmem:[%s3 + $0x8] sm:$0xf]
        %v507 = vld [vmem:[%s3 + $0xc] sm:$0xf]
        %v508 = vld [vmem:[%s3 + $0x10] sm:$0xf]
        %v509 = vld [vmem:[%s3 + $0x14] sm:$0xf]
        %v510 = vld [vmem:[%s3 + $0x18] sm:$0xf]
        %v511 = vld [vmem:[%s3 + $0x1c] sm:$0xf]
        %v512 = vld [vmem:[%s3 + $0x20] sm:$0xf]
        %v513 = vld [vmem:[%s3 + $0x24] sm:$0xf]
        %v514 = vld [vmem:[%s3 + $0x28] sm:$0xf]
        %v515 = vld [vmem:[%s3 + $0x2c] sm:$0xf]
        %v516 = vld [vmem:[%s3 + $0x30] sm:$0xf]
        %v517 = vld [vmem:[%s3 + $0x34] sm:$0xf]
        %v518 = vld [vmem:[%s3 + $0x38] sm:$0xf]
        %v519 = vld [vmem:[%s3 + $0x3c] sm:$0xf]
        %v536 = vunpack.c.l.b16 %v504
        %v537 = vunpack.c.l.b16 %v505
        %v538 = vunpack.c.l.b16 %v506
        %v539 = vunpack.c.l.b16 %v507
        %v540 = vunpack.c.l.b16 %v508
        %v541 = vunpack.c.l.b16 %v509
        %v542 = vunpack.c.l.b16 %v510
        %v543 = vunpack.c.l.b16 %v511
        %v544 = vunpack.c.l.b16 %v512
        %v545 = vunpack.c.l.b16 %v513
        %v546 = vunpack.c.l.b16 %v514
        %v547 = vunpack.c.l.b16 %v515
        %v548 = vunpack.c.l.b16 %v516
        %v549 = vunpack.c.l.b16 %v517
        %v550 = vunpack.c.l.b16 %v518
        %v551 = vunpack.c.l.b16 %v519
        %v552 = vpack.c.b16 %v537, %v536
        %v553 = vpack.c.b16 %v539, %v538
        %v554 = vpack.c.b16 %v541, %v540
        %v555 = vpack.c.b16 %v543, %v542
        %v556 = vpack.c.b16 %v545, %v544
        %v557 = vpack.c.b16 %v547, %v546
        %v558 = vpack.c.b16 %v549, %v548
        %v559 = vpack.c.b16 %v551, %v550
        %568 = vmatprep.subr.bf16.mxu0 0
        %569 = vmatpush1.bf16.msra.mxu0 %v552
        %570 = vmatprep.subr.bf16.mxu0 0
        %571 = vmatpush1.bf16.msra.mxu0 %v553
        %572 = vmatprep.subr.bf16.mxu0 0
        %573 = vmatpush1.bf16.msra.mxu0 %v554
        %574 = vmatprep.subr.bf16.mxu0 0
        %575 = vmatpush1.bf16.msra.mxu0 %v555
        %576 = vmatprep.subr.bf16.mxu0 0
        %577 = vmatpush1.bf16.msra.mxu0 %v556
        %578 = vmatprep.subr.bf16.mxu0 0
        %579 = vmatpush1.bf16.msra.mxu0 %v557
        %580 = vmatprep.subr.bf16.mxu0 0
        %581 = vmatpush1.bf16.msra.mxu0 %v558
        %582 = vmatprep.subr.bf16.mxu0 0
        %583 = vmatpush1.bf16.msra.mxu0 %v559
        %584 = vmatprep.subr.bf16.mxu0 0
        %585 = vmatpush1.bf16.msra.mxu0 0
        %586 = vmatprep.subr.bf16.mxu0 0
        %587 = vmatpush1.bf16.msra.mxu0 0
        %588 = vmatprep.subr.bf16.mxu0 0
        %589 = vmatpush1.bf16.msra.mxu0 0
        %590 = vmatprep.subr.bf16.mxu0 0
        %591 = vmatpush1.bf16.msra.mxu0 0
        %592 = vmatprep.subr.bf16.mxu0 0
        %593 = vmatpush1.bf16.msra.mxu0 0
        %594 = vmatprep.subr.bf16.mxu0 0
        %595 = vmatpush1.bf16.msra.mxu0 0
        %596 = vmatprep.subr.bf16.mxu0 0
        %597 = vmatpush1.bf16.msra.mxu0 0
        %598 = vmatprep.subr.bf16.mxu0 0
        %599 = vmatpush1.bf16.msra.mxu0 0
        %600 = vmatprep.mubr.bf16.mxu0 0
        %601 = vmatmul.mubr.bf16.gmra.mrb[0].mxu0 %v500
        %v602 = vpop.f32.mrb[0].mxu0
        %v603 = vadd.f32 0.0, %v602
        %v604 = vpop.f32.mrb[0].mxu0
        %v605 = vpop.f32.mrb[0].mxu0
        %v606 = vadd.f32 0.0, %v605
        %v607 = vpop.f32.mrb[0].mxu0
        %608 = vmatprep.mubr.bf16.mxu0 0
        %609 = vmatmul.mubr.bf16.gmra.mrb[0].mxu0 %v501
        %v610 = vpop.f32.mrb[0].mxu0
        %v611 = vadd.f32 0.0, %v610
        %v612 = vpop.f32.mrb[0].mxu0
        %v613 = vpop.f32.mrb[0].mxu0
        %v614 = vadd.f32 0.0, %v613
        %v615 = vpop.f32.mrb[0].mxu0
        %616 = vmatprep.mubr.bf16.mxu0 0
        %617 = vmatmul.mubr.bf16.gmra.mrb[0].mxu0 %v502
        %v618 = vpop.f32.mrb[0].mxu0
        %v619 = vadd.f32 0.0, %v618
        %v620 = vpop.f32.mrb[0].mxu0
        %v621 = vpop.f32.mrb[0].mxu0
        %v622 = vadd.f32 0.0, %v621
        %v623 = vpop.f32.mrb[0].mxu0
        %624 = vmatprep.mubr.bf16.mxu0 0
        %625 = vmatmul.mubr.bf16.gmra.mrb[0].mxu0 %v503
        %v626 = vpop.f32.mrb[0].mxu0
        %v627 = vadd.f32 0.0, %v626
        %v628 = vpop.f32.mrb[0].mxu0
        %v629 = vpop.f32.mrb[0].mxu0
        %v630 = vadd.f32 0.0, %v629
        %v631 = vpop.f32.mrb[0].mxu0
        %632 = vdwg.mxu0
        %v633 = vmul.f32 %v603, 2.0
        %v634 = vmul.f32 %v606, 2.0
        %v635 = vmul.f32 %v611, 2.0
        %v636 = vmul.f32 %v614, 2.0
        %v637 = vmul.f32 %v619, 2.0
        %v638 = vmul.f32 %v622, 2.0
        %v639 = vmul.f32 %v627, 2.0
        %v640 = vmul.f32 %v630, 2.0
        %v641 = vsub.f32 %v485, %v633
        %v642 = vsub.f32 %v487, %v634
        %v643 = vsub.f32 %v489, %v635
        %v644 = vsub.f32 %v491, %v636
        %v645 = vsub.f32 %v493, %v637
        %v646 = vsub.f32 %v495, %v638
        %v647 = vsub.f32 %v497, %v639
        %v648 = vsub.f32 %v499, %v640
        %v649 = vld [vmem:[%s4] sm:$0x1]
        %v651 = vlaneseq
        %v652 = vshrl.u32 %v651, 7
        %v653 = vsub.s32 0, %v652
        %v654 = vrot.slane %v649, %v653
        %v656 = vadd.f32 %v641, %v654
        %v657 = vadd.f32 %v642, %v654
        %v658 = vadd.f32 %v643, %v654
        %v659 = vadd.f32 %v644, %v654
        %v660 = vadd.f32 %v645, %v654
        %v661 = vadd.f32 %v646, %v654
        %v662 = vadd.f32 %v647, %v654
        %v663 = vadd.f32 %v648, %v654
        %v664 = vmax.f32 %v656, 0.0
        %v665 = vmax.f32 %v657, 0.0
        %v666 = vmax.f32 %v658, 0.0
        %v667 = vmax.f32 %v659, 0.0
        %v668 = vmax.f32 %v660, 0.0
        %v669 = vmax.f32 %v661, 0.0
        %v670 = vmax.f32 %v662, 0.0
        %v671 = vmax.f32 %v663, 0.0
        %672 = vst [vmem:[%s297] sm:$0xff] %v664
        %673 = vst [vmem:[%s297 + $0x8] sm:$0xff] %v665
        %674 = vst [vmem:[%s297 + $0x10] sm:$0xff] %v666
        %675 = vst [vmem:[%s297 + $0x18] sm:$0xff] %v667
        %676 = vst [vmem:[%s297 + $0x20] sm:$0xff] %v668
        %677 = vst [vmem:[%s297 + $0x28] sm:$0xff] %v669
        %678 = vst [vmem:[%s297 + $0x30] sm:$0xff] %v670
        %679 = vst [vmem:[%s297 + $0x38] sm:$0xff] %v671
        %v680 = vmin.f32 %v664, %v668
        %v681 = vmin.f32 %v665, %v669
        %v682 = vmin.f32 %v666, %v670
        %v683 = vmin.f32 %v667, %v671
        %v684 = vmin.f32 %v680, %v681
        %v685 = vmin.f32 %v682, %v683
        %v686 = vmin.f32 %v684, %v685
        %v687 = vrot.slane %v686, 4
        %v688 = vmin.f32 %v686, %v687
        %v689 = vrot.slane %v688, 2
        %v690 = vmin.f32 %v688, %v689
        %v691 = vrot.slane %v690, 1
        %v692 = vmin.f32 %v690, %v691
        %693 = vst [vmem:[%s281] sm:$0x1] %v692
        %v694 = vadd.f32 %v664, %v665
        %v695 = vadd.f32 %v694, %v666
        %v696 = vadd.f32 %v695, %v667
        %v697 = vadd.f32 %v696, %v668
        %v698 = vadd.f32 %v697, %v669
        %v699 = vadd.f32 %v698, %v670
        %v700 = vadd.f32 %v699, %v671
        %v701 = vrot.slane %v700, 4
        %v702 = vadd.f32 %v700, %v701
        %v703 = vrot.slane %v702, 2
        %v704 = vadd.f32 %v702, %v703
        %v705 = vrot.slane %v704, 1
        %v706 = vadd.f32 %v704, %v705
        %v707 = vmul.f32 %v706, 0.015625
        %708 = vst [vmem:[%s287] sm:$0x1] %v707
        %p709 = scmp.lt.s32.totalorder %s25, 1
        %s710 = scalar_select %p709, %s25, 1
        %s711 = smul.addr %s710, 8
        %s712 = smul.addr %s711, 8
        %s713 = scalar_lea.vmem %s5, %s712
        %s714 = sand.u32 %s169, 1
        %s715 = scalar_lea.sflag [#allocation3], %s714
        %s716 = sand.u32 %s169, 1
        %s717 = scalar_lea.vmem [#allocation2], %s716
        %s718 = sand.u32 %s195, 1
        %s719 = scalar_lea.sflag [#allocation5], %s718
        %s720 = sand.u32 %s195, 1
        %s721 = scalar_lea.vmem [#allocation4], %s720
        // Predicated region
        $region41: #{prototype_chooser_forward.1} parent=39 // pred_check
          %p722 = pneg %p153
        $region42: #{prototype_chooser_forward.1} parent=39 // pred_check_branch
          %724 = sbr.rel (%p722) target = $region44
        $region43: #{prototype_chooser_forward.1} parent=39 // pred_region
          _
        $region44: #{prototype_chooser_forward.1} parent=39 // pred_fallthru
          _
        // Predicated region
        $region45: #{prototype_chooser_forward.1} parent=39 // pred_check
          %p725 = pneg %p179
        $region46: #{prototype_chooser_forward.1} parent=39 // pred_check_branch
          %727 = sbr.rel (%p725) target = $region48
        $region47: #{prototype_chooser_forward.1} parent=39 // pred_region
          %s729 = ssub.s32 16, 16
          %730 = vsyncadd %s715, %s729
          %s731 = smul.addr %s25, 16
          %s732 = scalar_lea.hbm %s6, %s731
          %s734 = sshll.u32 %s717, 4
          %s735 = int_to_ptr.vmem [resolvable:$true] %s734
          %737 = dma.vmem_to_hbm [thread:$0]  %s735, 16, %s732, %s715
        $region48: #{prototype_chooser_forward.1} parent=39 // pred_fallthru
          _
        // Predicated region
        $region49: #{prototype_chooser_forward.1} parent=39 // pred_check
          %p738 = pneg %p205
        $region50: #{prototype_chooser_forward.1} parent=39 // pred_check_branch
          %740 = sbr.rel (%p738) target = $region52
        $region51: #{prototype_chooser_forward.1} parent=39 // pred_region
          %s742 = ssub.s32 16, 16
          %743 = vsyncadd %s719, %s742
          %s744 = smul.addr %s25, 16
          %s745 = scalar_lea.hbm %s7, %s744
          %s747 = sshll.u32 %s721, 4
          %s748 = int_to_ptr.vmem [resolvable:$true] %s747
          %750 = dma.vmem_to_hbm [thread:$0]  %s748, 16, %s745, %s719
        $region52: #{prototype_chooser_forward.1} parent=39 // pred_fallthru
          _
      $region40: #{prototype_chooser_forward.1} parent=5 // pred_fallthru
        _
      %p751 = scmp.le.s32.totalorder 2, %s20
      // Predicated region
      $region53: #{prototype_chooser_forward.1} parent=5 // pred_check
        %p752 = pneg %p751
      $region54: #{prototype_chooser_forward.1} parent=5 // pred_check_branch
        %754 = sbr.rel (%p752) target = $region56
      $region55: #{prototype_chooser_forward.1} parent=5 // pred_region
        %s755 = ssub.s32 %s20, 2
        // Predicated region
        $region57: #{prototype_chooser_forward.1} parent=55 // pred_check
          %p756 = pneg %p159
        $region58: #{prototype_chooser_forward.1} parent=55 // pred_check_branch
          %758 = sbr.rel (%p756) target = $region60
        $region59: #{prototype_chooser_forward.1} parent=55 // pred_region
          %p759 = scmp.lt.s32.totalorder %s26, 1
          %s760 = scalar_select %p759, %s26, 1
          %s761 = smul.addr %s760, 8
          %s762 = smul.addr %s761, 8
          %s763 = scalar_lea.vmem %s5, %s762
        $region60: #{prototype_chooser_forward.1} parent=55 // pred_fallthru
          _
        // Predicated region
        $region61: #{prototype_chooser_forward.1} parent=55 // pred_check
          %p764 = pneg %p185
        $region62: #{prototype_chooser_forward.1} parent=55 // pred_check_branch
          %766 = sbr.rel (%p764) target = $region64
        $region63: #{prototype_chooser_forward.1} parent=55 // pred_region
          %s767 = sand.u32 %s170, 1
          %s768 = scalar_lea.sflag [#allocation3], %s767
          %s769 = sand.u32 %s170, 1
          %s770 = scalar_lea.vmem [#allocation2], %s769
          %771 = dma.done %s768, 16
        $region64: #{prototype_chooser_forward.1} parent=55 // pred_fallthru
          _
        // Predicated region
        $region65: #{prototype_chooser_forward.1} parent=55 // pred_check
          %p772 = pneg %p211
        $region66: #{prototype_chooser_forward.1} parent=55 // pred_check_branch
          %774 = sbr.rel (%p772) target = $region68
        $region67: #{prototype_chooser_forward.1} parent=55 // pred_region
          %s775 = sand.u32 %s196, 1
          %s776 = scalar_lea.sflag [#allocation5], %s775
          %s777 = sand.u32 %s196, 1
          %s778 = scalar_lea.vmem [#allocation4], %s777
          %779 = dma.done %s776, 16
        $region68: #{prototype_chooser_forward.1} parent=55 // pred_fallthru
          _
      $region56: #{prototype_chooser_forward.1} parent=5 // pred_fallthru
        _
    $region6: #{prototype_chooser_forward.1} parent=1 // loop_footer
      %s24 = sadd.s32 1, %s20
    $region7: #{prototype_chooser_forward.1} parent=1 // loop_footer_branch
      %19 = sbr.rel target = $region3
    $region8: #{prototype_chooser_forward.1} parent=1 // loop_exit
      _
    %780 = vsyncpa [#allocation3], 1
    %s781 = scalar_lea.sflag [#allocation3], 1
    %782 = vsyncpa %s781, 1
    %783 = vsyncpa [#allocation5], 1
    %s784 = scalar_lea.sflag [#allocation5], 1
    %785 = vsyncpa %s784, 1

</llo_original>
